<compile_context>
chip_gen: v7x
topology: tpu7x:2x2x1
jax: 0.10.0
libtpu: 0.0.40
codegen_flags: <defaults>
</compile_context>

<pallas_src>
import math

import jax
import jax.numpy as jnp
from jax.experimental import pallas as pl
from jax.experimental.pallas import tpu as pltpu


def _rff_ffn_kernel(x_ref, w_ref, b_ref, wo_ref, bo_ref, o_ref):
    # x_ref:  (tm, D)  row tile of flattened input, f32 (cast in-kernel)
    # w_ref:  (D, R)   random-feature projection   (compute dtype)
    # b_ref:  (1, R)   random-feature phase        (f32)
    # wo_ref: (R, D)   output projection, transposed & pre-scaled by sqrt(2/R)
    # bo_ref: (1, D)   output bias                 (f32)
    xv = x_ref[...].astype(w_ref.dtype)           # in-kernel activation cast
    proj = jnp.dot(xv, w_ref[...], preferred_element_type=jnp.float32)
    feat = jnp.cos(proj + b_ref[...])             # f32 bias-add + cos
    out = jnp.dot(feat.astype(wo_ref.dtype), wo_ref[...],
                  preferred_element_type=jnp.float32)
    o_ref[...] = (out + bo_ref[...]).astype(o_ref.dtype)


def _round_up(a, m):
    return ((a + m - 1) // m) * m


def prepare_rff_params(W, b, W_out, b_out, *, compute_dtype=jnp.bfloat16):
    """One-time parameter preprocessing (hoisted out of the forward path):
    dtype cast, output-weight transpose, and folding sqrt(2/R) into it."""
    D, R = W.shape
    scale = math.sqrt(2.0 / R)
    return {
        "w": W.astype(compute_dtype),                      # (D, R)
        "b": b.reshape(1, R).astype(jnp.float32),          # (1, R)
        "wo_t": (W_out * scale).T.astype(compute_dtype),   # (R, D), scale folded
        "bo": b_out.reshape(1, D).astype(jnp.float32),     # (1, D)
    }


def rff_kernel_ffn(x, params, *, tm=1024, out_dtype=None):
    """x: (B, L, D) f32 -> (B, L, D).

    params: output of prepare_rff_params().
    tm: target row tile (sweep 1024..2048; amortizes per-grid-step overhead).
    """
    B, L, D = x.shape
    R = params["w"].shape[1]
    M = B * L
    out_dtype = x.dtype if out_dtype is None else out_dtype

    # Row tile: as large as allowed, rounded to the 8-sublane granularity,
    # but small enough that grid >= 2 when M > 8 (keeps both v7x TCs busy).
    tm_eff = min(tm, _round_up(M, 8))
    if M > 8:
        tm_eff = min(tm_eff, _round_up(pl.cdiv(M, 2), 8))
    grid = pl.cdiv(M, tm_eff)

    # Free reshape (no copy, no dtype cast) -- cast happens inside the kernel.
    x_flat = x.reshape(M, D)

    # Explicit scoped-VMEM budget: double-buffered x/out tiles + resident
    # weights + headroom; keeps large tm from tripping the default limit.
    cbytes = jnp.dtype(params["w"].dtype).itemsize
    x_tile_b = tm_eff * D * jnp.dtype(x.dtype).itemsize
    o_tile_b = tm_eff * D * jnp.dtype(out_dtype).itemsize
    w_bytes = (D * R + R * D) * cbytes + (R + D) * 4
    vmem_limit = int(min(48 << 20,
                         2 * (x_tile_b + o_tile_b) + 2 * w_bytes + (8 << 20)))

    out_flat = pl.pallas_call(
        _rff_ffn_kernel,
        out_shape=jax.ShapeDtypeStruct((M, D), out_dtype),
        grid_spec=pltpu.PrefetchScalarGridSpec(
            num_scalar_prefetch=0,
            grid=(grid,),
            in_specs=[
                pl.BlockSpec((tm_eff, D), lambda i: (i, 0)),  # x row tile
                pl.BlockSpec((D, R), lambda i: (0, 0)),       # W (VMEM-resident)
                pl.BlockSpec((1, R), lambda i: (0, 0)),       # b
                pl.BlockSpec((R, D), lambda i: (0, 0)),       # sqrt(2/R)*W_out^T
                pl.BlockSpec((1, D), lambda i: (0, 0)),       # b_out
            ],
            out_specs=pl.BlockSpec((tm_eff, D), lambda i: (i, 0)),
        ),
        compiler_params=pltpu.CompilerParams(
            dimension_semantics=("parallel",),
            vmem_limit_bytes=vmem_limit),
    )(x_flat, params["w"], params["b"], params["wo_t"], params["bo"])

    return out_flat.reshape(B, L, D)


def rff_kernel_ffn_ref(x, W, b, W_out, b_out):
    """Pure-JAX reference mirroring the PyTorch forward."""
    B, L, D = x.shape
    R = W.shape[1]
    x_flat = x.reshape(B * L, D)
    proj = x_flat @ W + b
    feat = math.sqrt(2.0 / R) * jnp.cos(proj)
    out = feat @ W_out.T + b_out
    return out.reshape(B, L, D)


if __name__ == "__main__":
    # Config consistent with the module: emb_dim=32, rff_dim=4*emb_dim=128,
    # sigma=1.0, batch=2, seq=8.
    B, L, D = 2, 8, 32
    R = 4 * D
    sigma = 1.0

    key = jax.random.PRNGKey(0)
    k_x, k_w, k_b, k_wo, k_bo = jax.random.split(key, 5)

    x = jax.random.normal(k_x, (B, L, D), dtype=jnp.float32)

    # Parameters (same shapes/init style as the nn.Module):
    W = jax.random.normal(k_w, (D, R), dtype=jnp.float32) / sigma
    b = 2.0 * math.pi * jax.random.uniform(k_b, (R,), dtype=jnp.float32)
    bound = 1.0 / math.sqrt(R)                       # nn.Linear default init
    W_out = jax.random.uniform(k_wo, (D, R), dtype=jnp.float32,
                               minval=-bound, maxval=bound)
    b_out = jax.random.uniform(k_bo, (D,), dtype=jnp.float32,
                               minval=-bound, maxval=bound)

    ref = rff_kernel_ffn_ref(x, W, b, W_out, b_out)

    # f32 compute path (tolerance allows for MXU f32-emulation differences
    # between the Pallas dot and the XLA reference dot).
    params_f32 = prepare_rff_params(W, b, W_out, b_out,
                                    compute_dtype=jnp.float32)
    out_f32 = jax.block_until_ready(rff_kernel_ffn(x, params_f32))
    assert out_f32.shape == (B, L, D)
    assert jnp.allclose(out_f32, ref, atol=5e-3, rtol=5e-3), \
        "f32 path mismatch vs reference"

    # Default fast path: bf16 matmul operands, f32 accumulation & epilogue.
    params_bf16 = prepare_rff_params(W, b, W_out, b_out,
                                     compute_dtype=jnp.bfloat16)
    out_bf16 = jax.block_until_ready(rff_kernel_ffn(x, params_bf16))
    assert out_bf16.shape == (B, L, D)
    assert jnp.allclose(out_bf16, ref, atol=6e-2, rtol=6e-2), \
        "bf16 path mismatch vs reference"

    print("KERNEL_OK")
</pallas_src>

<mosaic_0001>
module attributes {stable_mosaic.version = 11 : i64} {
  func.func @_rff_ffn_kernel(%arg0: i32, %arg1: memref<8x32xf32, #tpu.memory_space<vmem>>, %arg2: memref<32x128xf32, #tpu.memory_space<vmem>>, %arg3: memref<1x128xf32, #tpu.memory_space<vmem>>, %arg4: memref<128x32xf32, #tpu.memory_space<vmem>>, %arg5: memref<1x32xf32, #tpu.memory_space<vmem>>, %arg6: memref<8x32xf32, #tpu.memory_space<vmem>>) attributes {dimension_semantics = [#tpu.dimension_semantics<parallel>], iteration_bounds = array<i64: 2>, scalar_prefetch = 0 : i64, scratch_operands = 0 : i64, tpu.core_type = #tpu.core_type<tc>, window_params = [{transform_indices = @transform_0, window_bounds = array<i64: 8, 32>}, {pipeline_mode = #tpu.pipeline_mode<synchronous>, transform_indices = @transform_1, window_bounds = array<i64: 32, 128>}, {pipeline_mode = #tpu.pipeline_mode<synchronous>, transform_indices = @transform_2, window_bounds = array<i64: 1, 128>}, {pipeline_mode = #tpu.pipeline_mode<synchronous>, transform_indices = @transform_3, window_bounds = array<i64: 128, 32>}, {pipeline_mode = #tpu.pipeline_mode<synchronous>, transform_indices = @transform_4, window_bounds = array<i64: 1, 32>}, {transform_indices = @transform_5, window_bounds = array<i64: 8, 32>}]} {
    %c0 = arith.constant 0 : index
    %c0_0 = arith.constant 0 : index
    %0 = vector.load %arg1[%c0, %c0_0] : memref<8x32xf32, #tpu.memory_space<vmem>>, vector<8x32xf32>
    %c0_1 = arith.constant 0 : index
    %c0_2 = arith.constant 0 : index
    %1 = vector.load %arg2[%c0_1, %c0_2] : memref<32x128xf32, #tpu.memory_space<vmem>>, vector<32x128xf32>
    %cst = arith.constant dense<0.000000e+00> : vector<8x128xf32>
    %2 = tpu.matmul %0, %1, %cst {dimension_numbers = #tpu.dot_dimension_numbers<[1], [0], [0], [1], [0, 0, 1, 1], [], []>} : vector<8x32xf32>, vector<32x128xf32>, vector<8x128xf32> -> vector<8x128xf32>
    %c0_3 = arith.constant 0 : index
    %c0_4 = arith.constant 0 : index
    %3 = vector.load %arg3[%c0_3, %c0_4] : memref<1x128xf32, #tpu.memory_space<vmem>>, vector<1x128xf32>
    %4 = vector.broadcast %3 : vector<1x128xf32> to vector<8x128xf32>
    %5 = arith.addf %2, %4 : vector<8x128xf32>
    %6 = math.cos %5 : vector<8x128xf32>
    %c0_5 = arith.constant 0 : index
    %c0_6 = arith.constant 0 : index
    %7 = vector.load %arg4[%c0_5, %c0_6] : memref<128x32xf32, #tpu.memory_space<vmem>>, vector<128x32xf32>
    %cst_7 = arith.constant dense<0.000000e+00> : vector<8x32xf32>
    %8 = tpu.matmul %6, %7, %cst_7 {dimension_numbers = #tpu.dot_dimension_numbers<[1], [0], [0], [1], [0, 0, 1, 1], [], []>} : vector<8x128xf32>, vector<128x32xf32>, vector<8x32xf32> -> vector<8x32xf32>
    %c0_8 = arith.constant 0 : index
    %c0_9 = arith.constant 0 : index
    %9 = vector.load %arg5[%c0_8, %c0_9] : memref<1x32xf32, #tpu.memory_space<vmem>>, vector<1x32xf32>
    %10 = vector.broadcast %9 : vector<1x32xf32> to vector<8x32xf32>
    %11 = arith.addf %8, %10 : vector<8x32xf32>
    %c0_10 = arith.constant 0 : index
    %c0_11 = arith.constant 0 : index
    %12 = vector.load %arg6[%c0_10, %c0_11] : memref<8x32xf32, #tpu.memory_space<vmem>>, vector<8x32xf32>
    tpu.vector_store %arg6[%c0_10, %c0_11], %11 {strides = array<i32>} : memref<8x32xf32, #tpu.memory_space<vmem>>, vector<8x32xf32>,
    return
  }
  func.func @transform_0(%arg0: i32) -> (i32, i32) {
    %c0_i32 = arith.constant 0 : i32
    %c0_i32_0 = arith.constant 0 : i32
    return %arg0, %c0_i32 : i32, i32
  }
  func.func @transform_1(%arg0: i32) -> (i32, i32) {
    %c0_i32 = arith.constant 0 : i32
    %c0_i32_0 = arith.constant 0 : i32
    %c0_i32_1 = arith.constant 0 : i32
    return %c0_i32, %c0_i32_0 : i32, i32
  }
  func.func @transform_2(%arg0: i32) -> (i32, i32) {
    %c0_i32 = arith.constant 0 : i32
    %c0_i32_0 = arith.constant 0 : i32
    %c0_i32_1 = arith.constant 0 : i32
    return %c0_i32, %c0_i32_0 : i32, i32
  }
  func.func @transform_3(%arg0: i32) -> (i32, i32) {
    %c0_i32 = arith.constant 0 : i32
    %c0_i32_0 = arith.constant 0 : i32
    %c0_i32_1 = arith.constant 0 : i32
    return %c0_i32, %c0_i32_0 : i32, i32
  }
  func.func @transform_4(%arg0: i32) -> (i32, i32) {
    %c0_i32 = arith.constant 0 : i32
    %c0_i32_0 = arith.constant 0 : i32
    %c0_i32_1 = arith.constant 0 : i32
    return %c0_i32, %c0_i32_0 : i32, i32
  }
  func.func @transform_5(%arg0: i32) -> (i32, i32) {
    %c0_i32 = arith.constant 0 : i32
    %c0_i32_0 = arith.constant 0 : i32
    return %arg0, %c0_i32 : i32, i32
  }
}

</mosaic_0001>

<llo_original>
// kernel: tpu_custom_call.1
$region0: #{tpu_custom_call.1}
  #allocation0 [shape = 'u32[]', space=smem, size = 0x4, offset = 0x4, fixed_abs, tag = 'smem constant byte address 0x4 - core index']
  #allocation1 [shape = 'u32[144,128]{1,0:T(1,128)}', space=vmem, size = 0x12000, scoped, tag = 'internal scratch']
  %s0 = inlined_call_operand.vmem [shape: f32[16,32], index: 0, kind: input, shape index: {}]
  %s1 = inlined_call_operand.vmem [shape: f32[32,128], index: 1, kind: input, shape index: {}]
  %s2 = inlined_call_operand.vmem [shape: f32[1,128], index: 2, kind: input, shape index: {}]
  %s3 = inlined_call_operand.vmem [shape: f32[128,32], index: 3, kind: input, shape index: {}]
  %s4 = inlined_call_operand.vmem [shape: f32[1,32], index: 4, kind: input, shape index: {}]
  %s5 = inlined_call_operand.hbm [shape: f32[16,32], index: 5, kind: output, shape index: {}]
  %s6 = sld [smem:[#allocation0]]
  $region53: #{tpu_custom_call.1} parent=0
    _
  %s8 = ssub.s32 1, %s6
  %s9 = scalar_select 0, %s8, %s6
  $region1: #{tpu_custom_call.1} parent=0
    #allocation2 [shape = 'u8[8192]{0}', space=vmem, size = 0x2000, scoped, tag = 'output window, operand 0']
    #allocation3 [shape = 's32[2]{0}', space=sflag, size = 0x8, scoped, tag = 'scoped memory for tpu_custom_call.1']
    %10 = vsyncpa [#allocation3], 0
    %s11 = scalar_lea.sflag [#allocation3], 1
    %12 = vsyncpa %s11, 0
    loop: start=0, step=1, limit=4
    $region2: #{tpu_custom_call.1} parent=1 // loop_pre_header
      _
    $region3: #{tpu_custom_call.1} parent=1 // loop_header
      %s14 = sphi 0, %s18
      %p15 = scmp.ge.s32.totalorder %s14, 4
      %s24 = sphi 0, %s26
      %s27 = sphi 0, %s24
      %s28 = sphi 0, %s27
      %s44 = sphi 0, %s28
      %s48 = sphi 0, %s48
      %s50 = sphi 0, %s48
      %s51 = sphi 0, %s50
      %s65 = sphi 0, %s51
      %s69 = sphi 0, %s69
      %s71 = sphi 0, %s69
      %s72 = sphi 0, %s71
      %s86 = sphi 0, %s72
      %s90 = sphi 0, %s90
      %s92 = sphi 0, %s90
      %s93 = sphi 0, %s92
      %s107 = sphi 0, %s93
      %s111 = sphi 0, %s111
      %s113 = sphi 0, %s111
      %s114 = sphi 0, %s113
      %s128 = sphi 0, %s114
      %s134 = sphi 0, %s136
      %s137 = sphi 0, %s134
      %s138 = sphi 0, %s137
      %s154 = sphi 0, %s138
    $region4: #{tpu_custom_call.1} parent=1 // loop_header_branch
      %17 = sbr.rel (%p15) target = $region8
    $region5: #{tpu_custom_call.1} parent=1 // loop_body
      %s19 = ssub.s32 %s14, 1
      %s20 = ssub.s32 %s14, 2
      %s21 = sadd.s32 %s14, 1
      %s22 = ssub.s32 %s14, %s21
      %p23 = scmp.eq.s32.totalorder %s22, 0
      %s25 = sadd.s32 %s24, 1
      %s26 = scalar_select %p23, %s24, %s25
      %p29 = pneg %p23
      %p30 = scmp.eq.s32.totalorder %s14, 1
      %p31 = por %p29, %p30
      %p32 = scmp.ne.s32.totalorder %s24, %s27
      %p33 = scmp.eq.s32.totalorder %s14, 0
      %p34 = por %p32, %p33
      %p35 = scmp.ne.s32.totalorder %s24, %s27
      %p36 = scmp.eq.s32.totalorder %s19, 1
      %p37 = por %p35, %p36
      %p38 = scmp.ne.s32.totalorder %s27, %s28
      %p39 = scmp.eq.s32.totalorder %s19, 0
      %p40 = por %p38, %p39
      %p41 = scmp.ne.s32.totalorder %s27, %s28
      %p42 = scmp.eq.s32.totalorder %s20, 1
      %p43 = por %p41, %p42
      %p45 = scmp.ne.s32.totalorder %s28, %s44
      %p46 = scmp.eq.s32.totalorder %s20, 0
      %p47 = por %p45, %p46
      %s49 = sadd.s32 %s48, 1
      %p52 = scmp.eq.s32.totalorder %s14, 1
      %p53 = scmp.ne.s32.totalorder %s48, %s50
      %p54 = scmp.eq.s32.totalorder %s14, 0
      %p55 = por %p53, %p54
      %p56 = scmp.ne.s32.totalorder %s48, %s50
      %p57 = scmp.eq.s32.totalorder %s19, 1
      %p58 = por %p56, %p57
      %p59 = scmp.ne.s32.totalorder %s50, %s51
      %p60 = scmp.eq.s32.totalorder %s19, 0
      %p61 = por %p59, %p60
      %p62 = scmp.ne.s32.totalorder %s50, %s51
      %p63 = scmp.eq.s32.totalorder %s20, 1
      %p64 = por %p62, %p63
      %p66 = scmp.ne.s32.totalorder %s51, %s65
      %p67 = scmp.eq.s32.totalorder %s20, 0
      %p68 = por %p66, %p67
      %s70 = sadd.s32 %s69, 1
      %p73 = scmp.eq.s32.totalorder %s14, 1
      %p74 = scmp.ne.s32.totalorder %s69, %s71
      %p75 = scmp.eq.s32.totalorder %s14, 0
      %p76 = por %p74, %p75
      %p77 = scmp.ne.s32.totalorder %s69, %s71
      %p78 = scmp.eq.s32.totalorder %s19, 1
      %p79 = por %p77, %p78
      %p80 = scmp.ne.s32.totalorder %s71, %s72
      %p81 = scmp.eq.s32.totalorder %s19, 0
      %p82 = por %p80, %p81
      %p83 = scmp.ne.s32.totalorder %s71, %s72
      %p84 = scmp.eq.s32.totalorder %s20, 1
      %p85 = por %p83, %p84
      %p87 = scmp.ne.s32.totalorder %s72, %s86
      %p88 = scmp.eq.s32.totalorder %s20, 0
      %p89 = por %p87, %p88
      %s91 = sadd.s32 %s90, 1
      %p94 = scmp.eq.s32.totalorder %s14, 1
      %p95 = scmp.ne.s32.totalorder %s90, %s92
      %p96 = scmp.eq.s32.totalorder %s14, 0
      %p97 = por %p95, %p96
      %p98 = scmp.ne.s32.totalorder %s90, %s92
      %p99 = scmp.eq.s32.totalorder %s19, 1
      %p100 = por %p98, %p99
      %p101 = scmp.ne.s32.totalorder %s92, %s93
      %p102 = scmp.eq.s32.totalorder %s19, 0
      %p103 = por %p101, %p102
      %p104 = scmp.ne.s32.totalorder %s92, %s93
      %p105 = scmp.eq.s32.totalorder %s20, 1
      %p106 = por %p104, %p105
      %p108 = scmp.ne.s32.totalorder %s93, %s107
      %p109 = scmp.eq.s32.totalorder %s20, 0
      %p110 = por %p108, %p109
      %s112 = sadd.s32 %s111, 1
      %p115 = scmp.eq.s32.totalorder %s14, 1
      %p116 = scmp.ne.s32.totalorder %s111, %s113
      %p117 = scmp.eq.s32.totalorder %s14, 0
      %p118 = por %p116, %p117
      %p119 = scmp.ne.s32.totalorder %s111, %s113
      %p120 = scmp.eq.s32.totalorder %s19, 1
      %p121 = por %p119, %p120
      %p122 = scmp.ne.s32.totalorder %s113, %s114
      %p123 = scmp.eq.s32.totalorder %s19, 0
      %p124 = por %p122, %p123
      %p125 = scmp.ne.s32.totalorder %s113, %s114
      %p126 = scmp.eq.s32.totalorder %s20, 1
      %p127 = por %p125, %p126
      %p129 = scmp.ne.s32.totalorder %s114, %s128
      %p130 = scmp.eq.s32.totalorder %s20, 0
      %p131 = por %p129, %p130
      %s132 = ssub.s32 %s14, %s21
      %p133 = scmp.eq.s32.totalorder %s132, 0
      %s135 = sadd.s32 %s134, 1
      %s136 = scalar_select %p133, %s134, %s135
      %p139 = pneg %p133
      %p140 = scmp.eq.s32.totalorder %s14, 1
      %p141 = por %p139, %p140
      %p142 = scmp.ne.s32.totalorder %s134, %s137
      %p143 = scmp.eq.s32.totalorder %s14, 0
      %p144 = por %p142, %p143
      %p145 = scmp.ne.s32.totalorder %s134, %s137
      %p146 = scmp.eq.s32.totalorder %s19, 1
      %p147 = por %p145, %p146
      %p148 = scmp.ne.s32.totalorder %s137, %s138
      %p149 = scmp.eq.s32.totalorder %s19, 0
      %p150 = por %p148, %p149
      %p151 = scmp.ne.s32.totalorder %s137, %s138
      %p152 = scmp.eq.s32.totalorder %s20, 1
      %p153 = por %p151, %p152
      %p155 = scmp.ne.s32.totalorder %s138, %s154
      %p156 = scmp.eq.s32.totalorder %s20, 0
      %p157 = por %p155, %p156
      %p158 = scmp.le.s32.totalorder 1, %s14
      %p159 = scmp.lt.s32.totalorder %s14, 3
      %p160 = pnand %p158, %p159
      %p161 = pneg %p160
      // Predicated region
      $region9: #{tpu_custom_call.1} parent=5 // pred_check
        _
      $region10: #{tpu_custom_call.1} parent=5 // pred_check_branch
        %163 = sbr.rel (%p160) target = $region12
      $region11: #{tpu_custom_call.1} parent=5 // pred_region
        %s164 = ssub.s32 %s14, 1
        // Predicated region
        $region13: #{tpu_custom_call.1} parent=11 // pred_check
          %p165 = pneg %p61
        $region14: #{tpu_custom_call.1} parent=11 // pred_check_branch
          %167 = sbr.rel (%p165) target = $region16
        $region15: #{tpu_custom_call.1} parent=11 // pred_region
          _
        $region16: #{tpu_custom_call.1} parent=11 // pred_fallthru
          _
        // Predicated region
        $region17: #{tpu_custom_call.1} parent=11 // pred_check
          %p168 = pneg %p82
        $region18: #{tpu_custom_call.1} parent=11 // pred_check_branch
          %170 = sbr.rel (%p168) target = $region20
        $region19: #{tpu_custom_call.1} parent=11 // pred_region
          _
        $region20: #{tpu_custom_call.1} parent=11 // pred_fallthru
          _
        // Predicated region
        $region21: #{tpu_custom_call.1} parent=11 // pred_check
          %p171 = pneg %p103
        $region22: #{tpu_custom_call.1} parent=11 // pred_check_branch
          %173 = sbr.rel (%p171) target = $region24
        $region23: #{tpu_custom_call.1} parent=11 // pred_region
          _
        $region24: #{tpu_custom_call.1} parent=11 // pred_fallthru
          _
        // Predicated region
        $region25: #{tpu_custom_call.1} parent=11 // pred_check
          %p174 = pneg %p124
        $region26: #{tpu_custom_call.1} parent=11 // pred_check_branch
          %176 = sbr.rel (%p174) target = $region28
        $region27: #{tpu_custom_call.1} parent=11 // pred_region
          _
        $region28: #{tpu_custom_call.1} parent=11 // pred_fallthru
          _
      $region12: #{tpu_custom_call.1} parent=5 // pred_fallthru
        _
      %p177 = scmp.lt.s32.totalorder %s14, 2
      // Predicated region
      $region29: #{tpu_custom_call.1} parent=5 // pred_check
        %p178 = pneg %p177
      $region30: #{tpu_custom_call.1} parent=5 // pred_check_branch
        %180 = sbr.rel (%p178) target = $region32
      $region31: #{tpu_custom_call.1} parent=5 // pred_region
        // Predicated region
        $region33: #{tpu_custom_call.1} parent=31 // pred_check
          %p181 = pneg %p34
        $region34: #{tpu_custom_call.1} parent=31 // pred_check_branch
          %183 = sbr.rel (%p181) target = $region36
        $region35: #{tpu_custom_call.1} parent=31 // pred_region
          %p184 = scmp.lt.s32.totalorder %s14, 1
          %s185 = scalar_select %p184, %s14, 1
          %s186 = smul.addr %s185, 8
          %s187 = scalar_lea.vmem %s0, %s186
        $region36: #{tpu_custom_call.1} parent=31 // pred_fallthru
          _
      $region32: #{tpu_custom_call.1} parent=5 // pred_fallthru
        _
      %p188 = scmp.le.s32.totalorder 1, %s14
      %p189 = scmp.lt.s32.totalorder %s14, 3
      %p190 = pnand %p188, %p189
      %p191 = pneg %p190
      // Predicated region
      $region37: #{tpu_custom_call.1} parent=5 // pred_check
        _
      $region38: #{tpu_custom_call.1} parent=5 // pred_check_branch
        %193 = sbr.rel (%p190) target = $region40
      $region39: #{tpu_custom_call.1} parent=5 // pred_region
        %s194 = ssub.s32 %s14, 1
        %p195 = scmp.lt.s32.totalorder %s19, 1
        %s196 = scalar_select %p195, %s19, 1
        %s197 = smul.addr %s196, 8
        %s198 = scalar_lea.vmem %s0, %s197
        %p199 = pneg %p40
        %p200 = pneg %p37
        %p201 = pneg %p61
        %p202 = pneg %p58
        %p203 = pneg %p82
        %p204 = pneg %p79
        %p205 = pneg %p103
        %p206 = pneg %p100
        %p207 = pneg %p124
        %p208 = pneg %p121
        %p209 = pneg %p150
        %p210 = pneg %p147
        %s211 = sand.u32 %s137, 1
        %s212 = scalar_lea.sflag [#allocation3], %s211
        %s213 = sand.u32 %s137, 1
        %s214 = smul.addr %s213, 8
        %s215 = scalar_lea.vmem [#allocation2], %s214
        %p216 = scmp.lt.s32.totalorder %s19, 1
        %s217 = scalar_select %p216, %s19, 1
        %s218 = smul.addr %s217, 8
        %s219 = scalar_lea.vmem %s0, %s218
        %v220 = vld [vmem:[%s219] sm:$0xff]
        %v221 = vld [vmem:[%s1] sm:$0xff]
        %v222 = vld [vmem:[%s1 + $0x8] sm:$0xff]
        %v223 = vld [vmem:[%s1 + $0x10] sm:$0xff]
        %v224 = vld [vmem:[%s1 + $0x18] sm:$0xff]
        %v225 = vld [vmem:[%s2] sm:$0x1]
        %v227 = vlaneseq
        %v228 = vshrl.u32 %v227, 7
        %v229 = vsub.s32 0, %v228
        %v230 = vrot.slane %v225, %v229
        %vm232 = vcmask 261120
        %v234 = vsel %vm232, %v220, 0
        %236 = vmatprep.subr.mxu0 0.0
        %237 = vmatpush1.msra.mxu0 %v221
        %238 = vmatprep.subr.mxu0 0.0
        %239 = vmatpush1.msra.mxu0 %v222
        %240 = vmatprep.subr.mxu0 0.0
        %241 = vmatpush1.msra.mxu0 %v223
        %242 = vmatprep.subr.mxu0 0.0
        %243 = vmatpush1.msra.mxu0 %v224
        %244 = vmatprep.subr.mxu0 0.0
        %245 = vmatpush1.msra.mxu0 0.0
        %246 = vmatprep.subr.mxu0 0.0
        %247 = vmatpush1.msra.mxu0 0.0
        %248 = vmatprep.subr.mxu0 0.0
        %249 = vmatpush1.msra.mxu0 0.0
        %250 = vmatprep.subr.mxu0 0.0
        %251 = vmatpush1.msra.mxu0 0.0
        %252 = vmatprep.subr.mxu0 0.0
        %253 = vmatpush1.msra.mxu0 0.0
        %254 = vmatprep.subr.mxu0 0.0
        %255 = vmatpush1.msra.mxu0 0.0
        %256 = vmatprep.subr.mxu0 0.0
        %257 = vmatpush1.msra.mxu0 0.0
        %258 = vmatprep.subr.mxu0 0.0
        %259 = vmatpush1.msra.mxu0 0.0
        %260 = vmatprep.subr.mxu0 0.0
        %261 = vmatpush1.msra.mxu0 0.0
        %262 = vmatprep.subr.mxu0 0.0
        %263 = vmatpush1.msra.mxu0 0.0
        %264 = vmatprep.subr.mxu0 0.0
        %265 = vmatpush1.msra.mxu0 0.0
        %266 = vmatprep.subr.mxu0 0.0
        %267 = vmatpush1.msra.mxu0 0.0
        %268 = vmatprep.subr.mxu0 0.0
        %269 = vmatpush1.msra.mxu0 0.0
        %270 = vmatprep.subr.mxu0 0.0
        %271 = vmatpush1.msra.mxu0 0.0
        %272 = vmatprep.subr.mxu0 0.0
        %273 = vmatpush1.msra.mxu0 0.0
        %274 = vmatprep.subr.mxu0 0.0
        %275 = vmatpush1.msra.mxu0 0.0
        %276 = vmatprep.subr.mxu0 0.0
        %277 = vmatpush1.msra.mxu0 0.0
        %278 = vmatprep.subr.mxu0 0.0
        %279 = vmatpush1.msra.mxu0 0.0
        %280 = vmatprep.subr.mxu0 0.0
        %281 = vmatpush1.msra.mxu0 0.0
        %282 = vmatprep.subr.mxu0 0.0
        %283 = vmatpush1.msra.mxu0 0.0
        %284 = vmatprep.subr.mxu0 0.0
        %285 = vmatpush1.msra.mxu0 0.0
        %286 = vmatprep.subr.mxu0 0.0
        %287 = vmatpush1.msra.mxu0 0.0
        %288 = vmatprep.subr.mxu0 0.0
        %289 = vmatpush1.msra.mxu0 0.0
        %290 = vmatprep.subr.mxu0 0.0
        %291 = vmatpush1.msra.mxu0 0.0
        %292 = vmatprep.subr.mxu0 0.0
        %293 = vmatpush1.msra.mxu0 0.0
        %294 = vmatprep.subr.mxu0 0.0
        %295 = vmatpush1.msra.mxu0 0.0
        %296 = vmatprep.subr.mxu0 0.0
        %297 = vmatpush1.msra.mxu0 0.0
        %298 = vmatprep.subr.mxu0 0.0
        %299 = vmatpush1.msra.mxu0 0.0
        %300 = vmatprep.mubr.f32.mxu0 0.0
        %301 = vmatmul.mubr.f32.gmra.mrb[0].mxu0 %v234
        %v302 = vpop.f32.mrb[0].mxu0
        %v303 = vadd.f32 %v230, %v302
        %v304 = vpop.f32.mrb[0].mxu0
        %305 = vdwg.mxu0
        %v306 = vand.u32 2147483647, %v303
        %vm307 = vcmp.le.f32.partialorder %v306, 0.7853982
        %vm308 = vcmp.lt.s32.totalorder %v303, 0
        %v309 = vand.u32 %v303, 2139095040
        %v310 = vshrl.u32 %v309, 23
        %v311 = vsub.s32 %v310, 127
        %v312 = vand.u32 2147483647, %v303
        %v313 = vand.u32 %v312, 8388607
        %v314 = vor.u32 %v313, 8388608
        %v315 = vsub.s32 0, %v314
        %v316 = vadd.s32 %v311, 1
        %vm317 = vcmp.gt.s32.totalorder %v316, 0
        %v318 = vsel %vm317, %v316, 0
        %v319 = vshrl.u32 %v318, 5
        %v320 = vand.u32 %v318, 31
        %v321 = vsub.s32 32, %v320
        %v322 = vshrl.u32 683565275, %v321
        %v323 = vshll.u32 683565275, %v320
        %v324 = vshrl.u32 2475754826, %v321
        %v325 = vor.u32 %v323, %v324
        %v326 = vshll.u32 2475754826, %v320
        %v327 = vshrl.u32 2131351028, %v321
        %v328 = vor.u32 %v326, %v327
        %v329 = vshll.u32 2131351028, %v320
        %v330 = vshrl.u32 2102212464, %v321
        %v331 = vor.u32 %v329, %v330
        %v332 = vshll.u32 2102212464, %v320
        %v333 = vshrl.u32 920167782, %v321
        %v334 = vor.u32 %v332, %v333
        %v335 = vshll.u32 920167782, %v320
        %v336 = vshrl.u32 1326507024, %v321
        %v337 = vor.u32 %v335, %v336
        %vm338 = vcmp.lt.s32.totalorder %v319, 1
        %vm339 = vcmp.lt.s32.totalorder %v319, 2
        %vm340 = vcmp.lt.s32.totalorder %v319, 3
        %vm341 = vcmp.lt.s32.totalorder %v319, 4
        %v342 = vsel %vm338, %v322, %v325
        %v343 = vsel %vm341, %v331, 2102212464
        %v344 = vsel %vm340, %v328, %v343
        %v345 = vsel %vm339, %v342, %v344
        %v346 = vsel %vm338, %v325, %v328
        %v347 = vsel %vm341, %v334, 920167782
        %v348 = vsel %vm340, %v331, %v347
        %v349 = vsel %vm339, %v346, %v348
        %v350 = vsel %vm338, %v328, %v331
        %v351 = vsel %vm341, %v337, 1326507024
        %v352 = vsel %vm340, %v334, %v351
        %v353 = vsel %vm339, %v350, %v352
        %v354 = vshll.u32 %v314, 8
        %v355 = vmul.u32.u64.compose %v354, %v353
        %v356 = vextract.low.u32 %v355
        %v357 = vextract.high.u32 %v355
        %v358 = vmul.u32.u64.compose %v354, %v349
        %v359 = vextract.low.u32 %v358
        %v360 = vextract.high.u32 %v358
        %v361 = vmul.u32 %v354, %v345
        %v362 = vadd.s32 %v357, %v359
        %vm363 = vc.u32 %v357, %v359
        %v364 = vadd.s32 %v360, 1
        %v365 = vsel %vm363, %v364, %v360
        %v366 = vadd.s32 %v361, %v365
        %v367 = vadd.s32 %v366, 536870912
        %v368 = vshrl.u32 %v367, 30
        %v369 = vshll.u32 %v368, 30
        %v370 = vsub.s32 %v366, %v369
        %vm371 = vcmp.lt.s32.totalorder %v370, 0
        %v372 = vsub.s32 0, %v370
        %v373 = vsel %vm371, %v372, %v370
        %v374 = vclz %v373
        %v375 = vsub.s32 %v374, 2
        %vm376 = vcmp.gt.s32.totalorder 0, %v375
        %v377 = vsel %vm376, 0, %v375
        %v378 = vsub.s32 32, %v377
        %v379 = vshll.u32 %v370, %v377
        %v380 = vshrl.u32 %v362, %v378
        %v381 = vor.u32 %v379, %v380
        %v382 = vsub.s32 4294967266, %v377
        %v383 = vadd.s32 %v382, 127
        %v384 = vshll.u32 %v383, 23
        %v385 = vor.u32 4788187, %v384
        %v386 = vand.u32 2147483647, %v385
        %v388 = vcvt.s32.f32 %v381
        %v389 = vmul.f32 %v388, %v386
        %v390 = vxor.u32 %v389, 2147483648
        %v391 = vsel %vm308, %v390, %v389
        %v392 = vsub.s32 4, %v368
        %v393 = vsel %vm308, %v392, %v368
        %v394 = vsel %vm307, %v303, %v391
        %v395 = vsel %vm307, 0, %v393
        %v396 = vcosq.f32.pop %v394
        %v397 = vsinq.f32.pop %v394
        %vm398 = vweird.f32 %v303
        %v399 = vand.u32 %v395, 3
        %vm400 = vcmp.lt.s32.totalorder %v399, 2
        %vm401 = vcmp.eq.s32.totalorder %v399, 0
        %v402 = vxor.u32 %v397, 2147483648
        %v403 = vsel %vm401, %v396, %v402
        %vm404 = vcmp.eq.s32.totalorder %v399, 2
        %v405 = vxor.u32 %v396, 2147483648
        %v406 = vsel %vm404, %v405, %v397
        %v407 = vsel %vm400, %v403, %v406
        %v408 = vsel %vm398, nan, %v407
        %v409 = vld [vmem:[%s3] sm:$0xff]
        %v410 = vld [vmem:[%s3 + $0x8] sm:$0xff]
        %v411 = vld [vmem:[%s3 + $0x10] sm:$0xff]
        %v412 = vld [vmem:[%s3 + $0x18] sm:$0xff]
        %v413 = vld [vmem:[%s3 + $0x20] sm:$0xff]
        %v414 = vld [vmem:[%s3 + $0x28] sm:$0xff]
        %v415 = vld [vmem:[%s3 + $0x30] sm:$0xff]
        %v416 = vld [vmem:[%s3 + $0x38] sm:$0xff]
        %v417 = vld [vmem:[%s3 + $0x40] sm:$0xff]
        %v418 = vld [vmem:[%s3 + $0x48] sm:$0xff]
        %v419 = vld [vmem:[%s3 + $0x50] sm:$0xff]
        %v420 = vld [vmem:[%s3 + $0x58] sm:$0xff]
        %v421 = vld [vmem:[%s3 + $0x60] sm:$0xff]
        %v422 = vld [vmem:[%s3 + $0x68] sm:$0xff]
        %v423 = vld [vmem:[%s3 + $0x70] sm:$0xff]
        %v424 = vld [vmem:[%s3 + $0x78] sm:$0xff]
        %v425 = vld [vmem:[%s4] sm:$0x1]
        %v427 = vlaneseq
        %v428 = vshrl.u32 %v427, 7
        %v429 = vsub.s32 0, %v428
        %v430 = vrot.slane %v425, %v429
        %432 = vmatprep.subr.mxu0 0.0
        %433 = vmatpush1.msra.mxu0 %v409
        %434 = vmatprep.subr.mxu0 0.0
        %435 = vmatpush1.msra.mxu0 %v410
        %436 = vmatprep.subr.mxu0 0.0
        %437 = vmatpush1.msra.mxu0 %v411
        %438 = vmatprep.subr.mxu0 0.0
        %439 = vmatpush1.msra.mxu0 %v412
        %440 = vmatprep.subr.mxu0 0.0
        %441 = vmatpush1.msra.mxu0 %v413
        %442 = vmatprep.subr.mxu0 0.0
        %443 = vmatpush1.msra.mxu0 %v414
        %444 = vmatprep.subr.mxu0 0.0
        %445 = vmatpush1.msra.mxu0 %v415
        %446 = vmatprep.subr.mxu0 0.0
        %447 = vmatpush1.msra.mxu0 %v416
        %448 = vmatprep.subr.mxu0 0.0
        %449 = vmatpush1.msra.mxu0 %v417
        %450 = vmatprep.subr.mxu0 0.0
        %451 = vmatpush1.msra.mxu0 %v418
        %452 = vmatprep.subr.mxu0 0.0
        %453 = vmatpush1.msra.mxu0 %v419
        %454 = vmatprep.subr.mxu0 0.0
        %455 = vmatpush1.msra.mxu0 %v420
        %456 = vmatprep.subr.mxu0 0.0
        %457 = vmatpush1.msra.mxu0 %v421
        %458 = vmatprep.subr.mxu0 0.0
        %459 = vmatpush1.msra.mxu0 %v422
        %460 = vmatprep.subr.mxu0 0.0
        %461 = vmatpush1.msra.mxu0 %v423
        %462 = vmatprep.subr.mxu0 0.0
        %463 = vmatpush1.msra.mxu0 %v424
        %464 = vmatprep.subr.mxu0 0.0
        %465 = vmatpush1.msra.mxu0 0.0
        %466 = vmatprep.subr.mxu0 0.0
        %467 = vmatpush1.msra.mxu0 0.0
        %468 = vmatprep.subr.mxu0 0.0
        %469 = vmatpush1.msra.mxu0 0.0
        %470 = vmatprep.subr.mxu0 0.0
        %471 = vmatpush1.msra.mxu0 0.0
        %472 = vmatprep.subr.mxu0 0.0
        %473 = vmatpush1.msra.mxu0 0.0
        %474 = vmatprep.subr.mxu0 0.0
        %475 = vmatpush1.msra.mxu0 0.0
        %476 = vmatprep.subr.mxu0 0.0
        %477 = vmatpush1.msra.mxu0 0.0
        %478 = vmatprep.subr.mxu0 0.0
        %479 = vmatpush1.msra.mxu0 0.0
        %480 = vmatprep.subr.mxu0 0.0
        %481 = vmatpush1.msra.mxu0 0.0
        %482 = vmatprep.subr.mxu0 0.0
        %483 = vmatpush1.msra.mxu0 0.0
        %484 = vmatprep.subr.mxu0 0.0
        %485 = vmatpush1.msra.mxu0 0.0
        %486 = vmatprep.subr.mxu0 0.0
        %487 = vmatpush1.msra.mxu0 0.0
        %488 = vmatprep.subr.mxu0 0.0
        %489 = vmatpush1.msra.mxu0 0.0
        %490 = vmatprep.subr.mxu0 0.0
        %491 = vmatpush1.msra.mxu0 0.0
        %492 = vmatprep.subr.mxu0 0.0
        %493 = vmatpush1.msra.mxu0 0.0
        %494 = vmatprep.subr.mxu0 0.0
        %495 = vmatpush1.msra.mxu0 0.0
        %496 = vmatprep.mubr.f32.mxu0 0.0
        %497 = vmatmul.mubr.f32.gmra.mrb[0].mxu0 %v408
        %v498 = vpop.f32.mrb[0].mxu0
        %v499 = vadd.f32 %v430, %v498
        %v500 = vpop.f32.mrb[0].mxu0
        %501 = vdwg.mxu0
        %502 = vst.msk [vmem:[%s215] sm:$0xff] %vm232, %v499
        %s503 = sand.u32 %s137, 1
        %s504 = scalar_lea.sflag [#allocation3], %s503
        %s505 = sand.u32 %s137, 1
        %s506 = smul.addr %s505, 8
        %s507 = scalar_lea.vmem [#allocation2], %s506
        // Predicated region
        $region41: #{tpu_custom_call.1} parent=39 // pred_check
          %p508 = pneg %p147
        $region42: #{tpu_custom_call.1} parent=39 // pred_check_branch
          %510 = sbr.rel (%p508) target = $region44
        $region43: #{tpu_custom_call.1} parent=39 // pred_region
          %s512 = ssub.s32 128, 128
          %513 = vsyncadd %s504, %s512
          %s514 = smul.addr %s19, 128
          %s515 = scalar_lea.hbm %s5, %s514
          %s517 = sshll.u32 %s507, 4
          %s518 = int_to_ptr.vmem [resolvable:$true] %s517
          %520 = dma.vmem_to_hbm [thread:$0]  %s518, 128, %s515, %s504
        $region44: #{tpu_custom_call.1} parent=39 // pred_fallthru
          _
      $region40: #{tpu_custom_call.1} parent=5 // pred_fallthru
        _
      %p521 = scmp.le.s32.totalorder 2, %s14
      // Predicated region
      $region45: #{tpu_custom_call.1} parent=5 // pred_check
        %p522 = pneg %p521
      $region46: #{tpu_custom_call.1} parent=5 // pred_check_branch
        %524 = sbr.rel (%p522) target = $region48
      $region47: #{tpu_custom_call.1} parent=5 // pred_region
        %s525 = ssub.s32 %s14, 2
        // Predicated region
        $region49: #{tpu_custom_call.1} parent=47 // pred_check
          %p526 = pneg %p153
        $region50: #{tpu_custom_call.1} parent=47 // pred_check_branch
          %528 = sbr.rel (%p526) target = $region52
        $region51: #{tpu_custom_call.1} parent=47 // pred_region
          %s529 = sand.u32 %s138, 1
          %s530 = scalar_lea.sflag [#allocation3], %s529
          %s531 = sand.u32 %s138, 1
          %s532 = smul.addr %s531, 8
          %s533 = scalar_lea.vmem [#allocation2], %s532
          %534 = dma.done %s530, 128
        $region52: #{tpu_custom_call.1} parent=47 // pred_fallthru
          _
      $region48: #{tpu_custom_call.1} parent=5 // pred_fallthru
        _
    $region6: #{tpu_custom_call.1} parent=1 // loop_footer
      %s18 = sadd.s32 1, %s14
    $region7: #{tpu_custom_call.1} parent=1 // loop_footer_branch
      %13 = sbr.rel target = $region3
    $region8: #{tpu_custom_call.1} parent=1 // loop_exit
      _
    %535 = vsyncpa [#allocation3], 1
    %s536 = scalar_lea.sflag [#allocation3], 1
    %537 = vsyncpa %s536, 1

</llo_original>
